<compile_context>
chip_gen: v7x
topology: tpu7x:2x2x1
jax: 0.10.0
libtpu: 0.0.40
codegen_flags: <defaults>
</compile_context>

<pallas_src>
import math

import jax
import jax.numpy as jnp
from jax.experimental import pallas as pl
from jax.experimental.pallas import tpu as pltpu


_LANE = 128
_MAX_COLS = 8192                        # widest lane-dense slab we reshape to
_TILE_BYTES_TARGET = 12 * 1024 * 1024   # per in+out tile pair; double-buffered
                                        # total ~24 MiB fits v7x's 32 MiB
                                        # default scoped VMEM
_VMEM_LIMIT_BYTES = 48 * 1024 * 1024    # > v5e's 16 MiB default scoped VMEM,
                                        # < v7x's 64 MiB physical VMEM
_MIN_GRID_STEPS = 4                     # give both v7x TensorCores several tiles
_SMALL_INPUT_BYTES = 1 * 1024 * 1024    # below this a fused XLA convert wins


def _copy_cast_kernel(h_ref, o_ref):
    # Identity pass-through of the remote layer's result, cast to float32
    # (the module's only tensor-level effect on the returned tensors).
    o_ref[...] = h_ref[...].astype(o_ref.dtype)


def _lane_dense_view(shape, total):
    """Pick a (rows, cols) 2D view with cols a wide multiple of 128 if possible."""
    last = shape[-1]
    if last % _LANE == 0:
        # Free collapse of the leading dims; transformer activations land here.
        return total // last, last
    if total % _LANE == 0:
        # Widest multiple-of-128 divisor of `total`, capped at _MAX_COLS, so the
        # output stores are fat unmasked vst.  (The reshape may cost one XLA
        # relayout, but the kernel then streams at full lane width.)
        m = total // _LANE
        for d in range(min(m, _MAX_COLS // _LANE), 0, -1):
            if m % d == 0:
                return total // (_LANE * d), _LANE * d
    # Irregular shape: keep the full last dim (exempt from the 128 rule) and
    # tile over rows only.
    return total // last, last


def _choose_row_tile(rows, cols, in_itemsize, out_itemsize):
    # Sublane-packing granularity of the narrowest dtype involved.
    sub = max(8, 32 // min(in_itemsize, out_itemsize))
    if rows <= sub:
        return rows                      # single full-extent block
    bytes_per_row = cols * (in_itemsize + out_itemsize)
    # Largest row tile that keeps one in+out tile pair within the budget.
    row_tile = max(1, _TILE_BYTES_TARGET // bytes_per_row)
    # Keep >= _MIN_GRID_STEPS grid steps so the "parallel" axis gives both v7x
    # TensorCores work (neutral on single-TC v5e/v6e).
    row_tile = min(row_tile, pl.cdiv(rows, _MIN_GRID_STEPS), rows)
    if row_tile < rows:
        row_tile = max(sub, (row_tile // sub) * sub)
    return min(row_tile, rows)


@jax.jit
def _pallas_cast_f32(x):
    """Tiled, lane-dense Pallas copy of `x`, cast to float32."""
    orig_shape = x.shape
    total = math.prod(orig_shape)
    in_itemsize = jnp.dtype(x.dtype).itemsize
    out_itemsize = jnp.dtype(jnp.float32).itemsize

    rows, cols = _lane_dense_view(orig_shape, total)
    row_tile = _choose_row_tile(rows, cols, in_itemsize, out_itemsize)

    # Guard pathological shapes (e.g. one huge irregular row): if a
    # double-buffered in+out tile pair would not fit the scoped-VMEM budget,
    # let a fused XLA convert handle it instead of risking a VMEM OOM.
    tile_pair_bytes = row_tile * cols * (in_itemsize + out_itemsize)
    if 2 * tile_pair_bytes > _VMEM_LIMIT_BYTES - (4 << 20):
        return x.astype(jnp.float32)

    x2 = x.reshape(rows, cols)
    grid = (pl.cdiv(rows, row_tile),)

    out2 = pl.pallas_call(
        _copy_cast_kernel,
        out_shape=jax.ShapeDtypeStruct((rows, cols), jnp.float32),
        grid=grid,
        in_specs=[pl.BlockSpec((row_tile, cols), lambda i: (i, 0))],
        out_specs=pl.BlockSpec((row_tile, cols), lambda i: (i, 0)),
        compiler_params=pltpu.CompilerParams(
            # "parallel" lets Mosaic shard the streaming axis across both
            # TensorCores on v7x; neutral on single-TC v5e/v6e.
            dimension_semantics=("parallel",),
            vmem_limit_bytes=_VMEM_LIMIT_BYTES),
        cost_estimate=pl.CostEstimate(
            flops=0, transcendentals=0,
            bytes_accessed=total * (in_itemsize + out_itemsize)),
    )(x2)

    return out2.reshape(orig_shape)


def _passthrough_f32(x):
    if x.dtype == jnp.float32:
        # Already float32: the cast is a no-op — skip the kernel entirely
        # (zero HBM traffic, no pipeline overhead).
        return x
    if x.size * jnp.dtype(x.dtype).itemsize < _SMALL_INPUT_BYTES:
        # Tiny tensor: pallas_call launch + pipeline prologue dominate; a
        # fused XLA convert is strictly faster.
        return x.astype(jnp.float32)
    return _pallas_cast_f32(x)


def gptneox_server_forward(num, hidden_states, attention_mask=None,
                           head_mask=None, use_cache=False, layer_past=None,
                           output_attentions=False):
    # Debug prints mirroring the PyTorch module (wrapper/trace level only).
    print('sending layer')
    print('pseudolayer hidd', tuple(hidden_states.shape))
    print('pseudolayer attm',
          None if attention_mask is None else tuple(attention_mask.shape))
    print('pseudolayer hedm', head_mask)
    print('pseudolayer cach', use_cache)
    print('pseudolayer past', layer_past)
    print('pseudolayer outp', output_attentions)
    print('pseudo-layer creating X msg', num)

    # TODO(synk): the websocket round-trip (XNeoXMsg -> lien.send -> getAnswer)
    # has no Pallas equivalent; it is modeled as an identity pass-through of
    # hidden_states cast to float32, with attention_mask returned unchanged.
    out_hidden = _passthrough_f32(hidden_states)
    return (out_hidden, attention_mask)


if __name__ == "__main__":
    key = jax.random.PRNGKey(0)
    k_h, k_b = jax.random.split(key)

    # Small shapes consistent with the module's transformer-layer interface.
    batch, seq, hidden = 2, 8, 32
    hidden_states = jax.random.normal(k_h, (batch, seq, hidden),
                                      dtype=jnp.float32)
    # Typical additive attention mask [batch, 1, 1, seq]; passed through as-is.
    attention_mask = jnp.zeros((batch, 1, 1, seq), dtype=jnp.float32)

    out_hidden, out_mask = gptneox_server_forward(
        num=0,
        hidden_states=hidden_states,
        attention_mask=attention_mask,
        head_mask=None,
        use_cache=False,
        layer_past=None,
        output_attentions=False,
    )
    jax.block_until_ready(out_hidden)
    if out_mask is not None:
        jax.block_until_ready(out_mask)

    # Correctness: exact identity pass-through (cast to float32).
    assert out_hidden.shape == hidden_states.shape
    assert out_hidden.dtype == jnp.float32
    assert bool(jnp.all(out_hidden == hidden_states.astype(jnp.float32)))
    assert bool(jnp.all(out_mask == attention_mask))

    # Exercise the tiled Pallas copy/cast path with a bf16 activation that is
    # large enough (>1 MiB) to take the kernel route (lane-aligned last dim).
    x_bf16 = jax.random.normal(k_b, (8, 256, 512), dtype=jnp.bfloat16)
    y = _passthrough_f32(x_bf16)
    jax.block_until_ready(y)
    assert y.dtype == jnp.float32 and y.shape == x_bf16.shape
    assert bool(jnp.all(y == x_bf16.astype(jnp.float32)))

    # Irregular last dim (not a multiple of 128) goes through the kernel via
    # the wide lane-dense reshape branch.
    x_irr = jax.random.normal(k_b, (4, 1040, 192), dtype=jnp.bfloat16)
    y_irr = _passthrough_f32(x_irr)
    jax.block_until_ready(y_irr)
    assert y_irr.dtype == jnp.float32 and y_irr.shape == x_irr.shape
    assert bool(jnp.all(y_irr == x_irr.astype(jnp.float32)))

    print("KERNEL_OK")
</pallas_src>

<mosaic_0001>
module attributes {stable_mosaic.version = 11 : i64} {
  func.func @_copy_cast_kernel(%arg0: i32, %arg1: memref<512x512xbf16, #tpu.memory_space<vmem>>, %arg2: memref<512x512xf32, #tpu.memory_space<vmem>>) attributes {dimension_semantics = [#tpu.dimension_semantics<parallel>], iteration_bounds = array<i64: 4>, scalar_prefetch = 0 : i64, scratch_operands = 0 : i64, tpu.core_type = #tpu.core_type<tc>, window_params = [{transform_indices = @transform_0, window_bounds = array<i64: 512, 512>}, {transform_indices = @transform_1, window_bounds = array<i64: 512, 512>}]} {
    %c0 = arith.constant 0 : index
    %c0_0 = arith.constant 0 : index
    %0 = vector.load %arg1[%c0, %c0_0] : memref<512x512xbf16, #tpu.memory_space<vmem>>, vector<512x512xbf16>
    %1 = arith.extf %0 : vector<512x512xbf16> to vector<512x512xf32>
    %c0_1 = arith.constant 0 : index
    %c0_2 = arith.constant 0 : index
    %2 = vector.load %arg2[%c0_1, %c0_2] : memref<512x512xf32, #tpu.memory_space<vmem>>, vector<512x512xf32>
    tpu.vector_store %arg2[%c0_1, %c0_2], %1 {strides = array<i32>} : memref<512x512xf32, #tpu.memory_space<vmem>>, vector<512x512xf32>,
    return
  }
  func.func @transform_0(%arg0: i32) -> (i32, i32) {
    %c0_i32 = arith.constant 0 : i32
    %c0_i32_0 = arith.constant 0 : i32
    return %arg0, %c0_i32 : i32, i32
  }
  func.func @transform_1(%arg0: i32) -> (i32, i32) {
    %c0_i32 = arith.constant 0 : i32
    %c0_i32_0 = arith.constant 0 : i32
    return %arg0, %c0_i32 : i32, i32
  }
}

</mosaic_0001>

<llo_original>
// kernel: _pallas_cast_f32.1
$region0: #{_pallas_cast_f32.1}
  #allocation0 [shape = 'u32[]', space=smem, size = 0x4, offset = 0x4, fixed_abs, tag = 'smem constant byte address 0x4 - core index']
  #allocation1 [shape = 'u32[144,128]{1,0:T(1,128)}', space=vmem, size = 0x12000, scoped, tag = 'internal scratch']
  %s0 = inlined_call_operand.hbm [shape: bf16[2048,512], index: 0, kind: input, shape index: {}]
  %s1 = inlined_call_operand.hbm [shape: f32[2048,512], index: 1, kind: output, shape index: {}]
  %s2 = sld [smem:[#allocation0]]
  $region41: #{_pallas_cast_f32.1} parent=0
    _
  %s4 = ssub.s32 1, %s2
  %s5 = scalar_select 0, %s4, %s2
  $region1: #{_pallas_cast_f32.1} parent=0
    #allocation2 [shape = 'u8[1048576]{0}', space=vmem, size = 0x100000, scoped, tag = 'input window, operand 0']
    #allocation3 [shape = 's32[2]{0}', space=sflag, size = 0x8, scoped, tag = 'scoped memory for _pallas_cast_f32.1']
    #allocation4 [shape = 's32[2]{0}', space=sflag, size = 0x8, scoped, tag = 'scoped memory for _pallas_cast_f32.1']
    #allocation5 [shape = 'u8[2097152]{0}', space=vmem, size = 0x200000, scoped, tag = 'output window, operand 0']
    %6 = vsyncpa [#allocation3], 0
    %s7 = scalar_lea.sflag [#allocation3], 1
    %8 = vsyncpa %s7, 0
    %9 = vsyncpa [#allocation4], 0
    %s10 = scalar_lea.sflag [#allocation4], 1
    %11 = vsyncpa %s10, 0
    loop: start=0, step=1, limit=6
    $region2: #{_pallas_cast_f32.1} parent=1 // loop_pre_header
      _
    $region3: #{_pallas_cast_f32.1} parent=1 // loop_header
      %s13 = sphi 0, %s17
      %p14 = scmp.ge.s32.totalorder %s13, 6
      %s23 = sphi 0, %s25
      %s26 = sphi 0, %s23
      %s27 = sphi 0, %s26
      %s43 = sphi 0, %s27
      %s49 = sphi 0, %s51
      %s52 = sphi 0, %s49
      %s53 = sphi 0, %s52
      %s69 = sphi 0, %s53
    $region4: #{_pallas_cast_f32.1} parent=1 // loop_header_branch
      %16 = sbr.rel (%p14) target = $region8
    $region5: #{_pallas_cast_f32.1} parent=1 // loop_body
      %s18 = ssub.s32 %s13, 1
      %s19 = ssub.s32 %s13, 2
      %s20 = sadd.s32 %s13, 1
      %s21 = ssub.s32 %s13, %s20
      %p22 = scmp.eq.s32.totalorder %s21, 0
      %s24 = sadd.s32 %s23, 1
      %s25 = scalar_select %p22, %s23, %s24
      %p28 = pneg %p22
      %p29 = scmp.eq.s32.totalorder %s13, 3
      %p30 = por %p28, %p29
      %p31 = scmp.ne.s32.totalorder %s23, %s26
      %p32 = scmp.eq.s32.totalorder %s13, 0
      %p33 = por %p31, %p32
      %p34 = scmp.ne.s32.totalorder %s23, %s26
      %p35 = scmp.eq.s32.totalorder %s18, 3
      %p36 = por %p34, %p35
      %p37 = scmp.ne.s32.totalorder %s26, %s27
      %p38 = scmp.eq.s32.totalorder %s18, 0
      %p39 = por %p37, %p38
      %p40 = scmp.ne.s32.totalorder %s26, %s27
      %p41 = scmp.eq.s32.totalorder %s19, 3
      %p42 = por %p40, %p41
      %p44 = scmp.ne.s32.totalorder %s27, %s43
      %p45 = scmp.eq.s32.totalorder %s19, 0
      %p46 = por %p44, %p45
      %s47 = ssub.s32 %s13, %s20
      %p48 = scmp.eq.s32.totalorder %s47, 0
      %s50 = sadd.s32 %s49, 1
      %s51 = scalar_select %p48, %s49, %s50
      %p54 = pneg %p48
      %p55 = scmp.eq.s32.totalorder %s13, 3
      %p56 = por %p54, %p55
      %p57 = scmp.ne.s32.totalorder %s49, %s52
      %p58 = scmp.eq.s32.totalorder %s13, 0
      %p59 = por %p57, %p58
      %p60 = scmp.ne.s32.totalorder %s49, %s52
      %p61 = scmp.eq.s32.totalorder %s18, 3
      %p62 = por %p60, %p61
      %p63 = scmp.ne.s32.totalorder %s52, %s53
      %p64 = scmp.eq.s32.totalorder %s18, 0
      %p65 = por %p63, %p64
      %p66 = scmp.ne.s32.totalorder %s52, %s53
      %p67 = scmp.eq.s32.totalorder %s19, 3
      %p68 = por %p66, %p67
      %p70 = scmp.ne.s32.totalorder %s53, %s69
      %p71 = scmp.eq.s32.totalorder %s19, 0
      %p72 = por %p70, %p71
      %p73 = scmp.le.s32.totalorder 1, %s13
      %p74 = scmp.lt.s32.totalorder %s13, 5
      %p75 = pnand %p73, %p74
      %p76 = pneg %p75
      // Predicated region
      $region9: #{_pallas_cast_f32.1} parent=5 // pred_check
        _
      $region10: #{_pallas_cast_f32.1} parent=5 // pred_check_branch
        %78 = sbr.rel (%p75) target = $region12
      $region11: #{_pallas_cast_f32.1} parent=5 // pred_region
        %s79 = ssub.s32 %s13, 1
      $region12: #{_pallas_cast_f32.1} parent=5 // pred_fallthru
        _
      %p80 = scmp.lt.s32.totalorder %s13, 4
      // Predicated region
      $region13: #{_pallas_cast_f32.1} parent=5 // pred_check
        %p81 = pneg %p80
      $region14: #{_pallas_cast_f32.1} parent=5 // pred_check_branch
        %83 = sbr.rel (%p81) target = $region16
      $region15: #{_pallas_cast_f32.1} parent=5 // pred_region
        // Predicated region
        $region17: #{_pallas_cast_f32.1} parent=15 // pred_check
          %p84 = pneg %p33
        $region18: #{_pallas_cast_f32.1} parent=15 // pred_check_branch
          %86 = sbr.rel (%p84) target = $region20
        $region19: #{_pallas_cast_f32.1} parent=15 // pred_region
          %s87 = sand.u32 %s23, 1
          %s88 = scalar_lea.sflag [#allocation3], %s87
          %s89 = sand.u32 %s23, 1
          %s90 = smul.addr %s89, 1024
          %s91 = scalar_lea.vmem [#allocation2], %s90
          %s92 = smul.u32 64, %s13
          %s94 = ssub.s32 16384, 16384
          %95 = vsyncadd %s88, %s94
          %s96 = smul.addr %s92, 4
          %s97 = smul.addr %s96, 64
          %s98 = scalar_lea.hbm %s0, %s97
          %s99 = sshll.u32 %s91, 4
          %s100 = int_to_ptr.vmem [resolvable:$true] %s99
          %105 = dma.hbm_to_vmem [thread:$0]  %s98, 16384, %s100, %s88, 256, 256, 16
        $region20: #{_pallas_cast_f32.1} parent=15 // pred_fallthru
          _
      $region16: #{_pallas_cast_f32.1} parent=5 // pred_fallthru
        _
      %p106 = scmp.le.s32.totalorder 1, %s13
      %p107 = scmp.lt.s32.totalorder %s13, 5
      %p108 = pnand %p106, %p107
      %p109 = pneg %p108
      // Predicated region
      $region21: #{_pallas_cast_f32.1} parent=5 // pred_check
        _
      $region22: #{_pallas_cast_f32.1} parent=5 // pred_check_branch
        %111 = sbr.rel (%p108) target = $region24
      $region23: #{_pallas_cast_f32.1} parent=5 // pred_region
        %s112 = ssub.s32 %s13, 1
        %s113 = sand.u32 %s26, 1
        %s114 = scalar_lea.sflag [#allocation3], %s113
        %s115 = sand.u32 %s26, 1
        %s116 = smul.addr %s115, 1024
        %s117 = scalar_lea.vmem [#allocation2], %s116
        // Predicated region
        $region25: #{_pallas_cast_f32.1} parent=23 // pred_check
          %p118 = pneg %p39
        $region26: #{_pallas_cast_f32.1} parent=23 // pred_check_branch
          %120 = sbr.rel (%p118) target = $region28
        $region27: #{_pallas_cast_f32.1} parent=23 // pred_region
          %121 = dma.done %s114, 16384
        $region28: #{_pallas_cast_f32.1} parent=23 // pred_fallthru
          _
        %s122 = sand.u32 %s26, 1
        %s123 = scalar_lea.sflag [#allocation3], %s122
        %s124 = sand.u32 %s26, 1
        %s125 = smul.addr %s124, 1024
        %s126 = scalar_lea.vmem [#allocation2], %s125
        %p127 = pneg %p39
        %p128 = pneg %p36
        %p129 = pneg %p65
        %p130 = pneg %p62
        %s131 = sand.u32 %s52, 1
        %s132 = scalar_lea.sflag [#allocation4], %s131
        %s133 = sand.u32 %s52, 1
        %s134 = smul.addr %s133, 2048
        %s135 = scalar_lea.vmem [#allocation5], %s134
        %s136 = smul.u32 64, %s18
        %s137 = smul.u32 64, %s18
        %v138 = vld [vmem:[%s117] sm:$0xff]
        %v139 = vld [vmem:[%s117 + $0x8] sm:$0xff]
        %v140 = vld [vmem:[%s117 + $0x10] sm:$0xff]
        %v141 = vld [vmem:[%s117 + $0x18] sm:$0xff]
        %v142 = vld [vmem:[%s117 + $0x20] sm:$0xff]
        %v143 = vld [vmem:[%s117 + $0x28] sm:$0xff]
        %v144 = vld [vmem:[%s117 + $0x30] sm:$0xff]
        %v145 = vld [vmem:[%s117 + $0x38] sm:$0xff]
        %v146 = vld [vmem:[%s117 + $0x40] sm:$0xff]
        %v147 = vld [vmem:[%s117 + $0x48] sm:$0xff]
        %v148 = vld [vmem:[%s117 + $0x50] sm:$0xff]
        %v149 = vld [vmem:[%s117 + $0x58] sm:$0xff]
        %v150 = vld [vmem:[%s117 + $0x60] sm:$0xff]
        %v151 = vld [vmem:[%s117 + $0x68] sm:$0xff]
        %v152 = vld [vmem:[%s117 + $0x70] sm:$0xff]
        %v153 = vld [vmem:[%s117 + $0x78] sm:$0xff]
        %v154 = vld [vmem:[%s117 + $0x80] sm:$0xff]
        %v155 = vld [vmem:[%s117 + $0x88] sm:$0xff]
        %v156 = vld [vmem:[%s117 + $0x90] sm:$0xff]
        %v157 = vld [vmem:[%s117 + $0x98] sm:$0xff]
        %v158 = vld [vmem:[%s117 + $0xa0] sm:$0xff]
        %v159 = vld [vmem:[%s117 + $0xa8] sm:$0xff]
        %v160 = vld [vmem:[%s117 + $0xb0] sm:$0xff]
        %v161 = vld [vmem:[%s117 + $0xb8] sm:$0xff]
        %v162 = vld [vmem:[%s117 + $0xc0] sm:$0xff]
        %v163 = vld [vmem:[%s117 + $0xc8] sm:$0xff]
        %v164 = vld [vmem:[%s117 + $0xd0] sm:$0xff]
        %v165 = vld [vmem:[%s117 + $0xd8] sm:$0xff]
        %v166 = vld [vmem:[%s117 + $0xe0] sm:$0xff]
        %v167 = vld [vmem:[%s117 + $0xe8] sm:$0xff]
        %v168 = vld [vmem:[%s117 + $0xf0] sm:$0xff]
        %v169 = vld [vmem:[%s117 + $0xf8] sm:$0xff]
        %v170 = vld [vmem:[%s117 + $0x100] sm:$0xff]
        %v171 = vld [vmem:[%s117 + $0x108] sm:$0xff]
        %v172 = vld [vmem:[%s117 + $0x110] sm:$0xff]
        %v173 = vld [vmem:[%s117 + $0x118] sm:$0xff]
        %v174 = vld [vmem:[%s117 + $0x120] sm:$0xff]
        %v175 = vld [vmem:[%s117 + $0x128] sm:$0xff]
        %v176 = vld [vmem:[%s117 + $0x130] sm:$0xff]
        %v177 = vld [vmem:[%s117 + $0x138] sm:$0xff]
        %v178 = vld [vmem:[%s117 + $0x140] sm:$0xff]
        %v179 = vld [vmem:[%s117 + $0x148] sm:$0xff]
        %v180 = vld [vmem:[%s117 + $0x150] sm:$0xff]
        %v181 = vld [vmem:[%s117 + $0x158] sm:$0xff]
        %v182 = vld [vmem:[%s117 + $0x160] sm:$0xff]
        %v183 = vld [vmem:[%s117 + $0x168] sm:$0xff]
        %v184 = vld [vmem:[%s117 + $0x170] sm:$0xff]
        %v185 = vld [vmem:[%s117 + $0x178] sm:$0xff]
        %v186 = vld [vmem:[%s117 + $0x180] sm:$0xff]
        %v187 = vld [vmem:[%s117 + $0x188] sm:$0xff]
        %v188 = vld [vmem:[%s117 + $0x190] sm:$0xff]
        %v189 = vld [vmem:[%s117 + $0x198] sm:$0xff]
        %v190 = vld [vmem:[%s117 + $0x1a0] sm:$0xff]
        %v191 = vld [vmem:[%s117 + $0x1a8] sm:$0xff]
        %v192 = vld [vmem:[%s117 + $0x1b0] sm:$0xff]
        %v193 = vld [vmem:[%s117 + $0x1b8] sm:$0xff]
        %v194 = vld [vmem:[%s117 + $0x1c0] sm:$0xff]
        %v195 = vld [vmem:[%s117 + $0x1c8] sm:$0xff]
        %v196 = vld [vmem:[%s117 + $0x1d0] sm:$0xff]
        %v197 = vld [vmem:[%s117 + $0x1d8] sm:$0xff]
        %v198 = vld [vmem:[%s117 + $0x1e0] sm:$0xff]
        %v199 = vld [vmem:[%s117 + $0x1e8] sm:$0xff]
        %v200 = vld [vmem:[%s117 + $0x1f0] sm:$0xff]
        %v201 = vld [vmem:[%s117 + $0x1f8] sm:$0xff]
        %v202 = vld [vmem:[%s117 + $0x200] sm:$0xff]
        %v203 = vld [vmem:[%s117 + $0x208] sm:$0xff]
        %v204 = vld [vmem:[%s117 + $0x210] sm:$0xff]
        %v205 = vld [vmem:[%s117 + $0x218] sm:$0xff]
        %v206 = vld [vmem:[%s117 + $0x220] sm:$0xff]
        %v207 = vld [vmem:[%s117 + $0x228] sm:$0xff]
        %v208 = vld [vmem:[%s117 + $0x230] sm:$0xff]
        %v209 = vld [vmem:[%s117 + $0x238] sm:$0xff]
        %v210 = vld [vmem:[%s117 + $0x240] sm:$0xff]
        %v211 = vld [vmem:[%s117 + $0x248] sm:$0xff]
        %v212 = vld [vmem:[%s117 + $0x250] sm:$0xff]
        %v213 = vld [vmem:[%s117 + $0x258] sm:$0xff]
        %v214 = vld [vmem:[%s117 + $0x260] sm:$0xff]
        %v215 = vld [vmem:[%s117 + $0x268] sm:$0xff]
        %v216 = vld [vmem:[%s117 + $0x270] sm:$0xff]
        %v217 = vld [vmem:[%s117 + $0x278] sm:$0xff]
        %v218 = vld [vmem:[%s117 + $0x280] sm:$0xff]
        %v219 = vld [vmem:[%s117 + $0x288] sm:$0xff]
        %v220 = vld [vmem:[%s117 + $0x290] sm:$0xff]
        %v221 = vld [vmem:[%s117 + $0x298] sm:$0xff]
        %v222 = vld [vmem:[%s117 + $0x2a0] sm:$0xff]
        %v223 = vld [vmem:[%s117 + $0x2a8] sm:$0xff]
        %v224 = vld [vmem:[%s117 + $0x2b0] sm:$0xff]
        %v225 = vld [vmem:[%s117 + $0x2b8] sm:$0xff]
        %v226 = vld [vmem:[%s117 + $0x2c0] sm:$0xff]
        %v227 = vld [vmem:[%s117 + $0x2c8] sm:$0xff]
        %v228 = vld [vmem:[%s117 + $0x2d0] sm:$0xff]
        %v229 = vld [vmem:[%s117 + $0x2d8] sm:$0xff]
        %v230 = vld [vmem:[%s117 + $0x2e0] sm:$0xff]
        %v231 = vld [vmem:[%s117 + $0x2e8] sm:$0xff]
        %v232 = vld [vmem:[%s117 + $0x2f0] sm:$0xff]
        %v233 = vld [vmem:[%s117 + $0x2f8] sm:$0xff]
        %v234 = vld [vmem:[%s117 + $0x300] sm:$0xff]
        %v235 = vld [vmem:[%s117 + $0x308] sm:$0xff]
        %v236 = vld [vmem:[%s117 + $0x310] sm:$0xff]
        %v237 = vld [vmem:[%s117 + $0x318] sm:$0xff]
        %v238 = vld [vmem:[%s117 + $0x320] sm:$0xff]
        %v239 = vld [vmem:[%s117 + $0x328] sm:$0xff]
        %v240 = vld [vmem:[%s117 + $0x330] sm:$0xff]
        %v241 = vld [vmem:[%s117 + $0x338] sm:$0xff]
        %v242 = vld [vmem:[%s117 + $0x340] sm:$0xff]
        %v243 = vld [vmem:[%s117 + $0x348] sm:$0xff]
        %v244 = vld [vmem:[%s117 + $0x350] sm:$0xff]
        %v245 = vld [vmem:[%s117 + $0x358] sm:$0xff]
        %v246 = vld [vmem:[%s117 + $0x360] sm:$0xff]
        %v247 = vld [vmem:[%s117 + $0x368] sm:$0xff]
        %v248 = vld [vmem:[%s117 + $0x370] sm:$0xff]
        %v249 = vld [vmem:[%s117 + $0x378] sm:$0xff]
        %v250 = vld [vmem:[%s117 + $0x380] sm:$0xff]
        %v251 = vld [vmem:[%s117 + $0x388] sm:$0xff]
        %v252 = vld [vmem:[%s117 + $0x390] sm:$0xff]
        %v253 = vld [vmem:[%s117 + $0x398] sm:$0xff]
        %v254 = vld [vmem:[%s117 + $0x3a0] sm:$0xff]
        %v255 = vld [vmem:[%s117 + $0x3a8] sm:$0xff]
        %v256 = vld [vmem:[%s117 + $0x3b0] sm:$0xff]
        %v257 = vld [vmem:[%s117 + $0x3b8] sm:$0xff]
        %v258 = vld [vmem:[%s117 + $0x3c0] sm:$0xff]
        %v259 = vld [vmem:[%s117 + $0x3c8] sm:$0xff]
        %v260 = vld [vmem:[%s117 + $0x3d0] sm:$0xff]
        %v261 = vld [vmem:[%s117 + $0x3d8] sm:$0xff]
        %v262 = vld [vmem:[%s117 + $0x3e0] sm:$0xff]
        %v263 = vld [vmem:[%s117 + $0x3e8] sm:$0xff]
        %v264 = vld [vmem:[%s117 + $0x3f0] sm:$0xff]
        %v265 = vld [vmem:[%s117 + $0x3f8] sm:$0xff]
        %v266 = vunpack.c.l.bf16 %v138
        %v267 = vunpack.c.h.bf16 %v138
        %v268 = vunpack.c.l.bf16 %v139
        %v269 = vunpack.c.h.bf16 %v139
        %v270 = vunpack.c.l.bf16 %v140
        %v271 = vunpack.c.h.bf16 %v140
        %v272 = vunpack.c.l.bf16 %v141
        %v273 = vunpack.c.h.bf16 %v141
        %v274 = vunpack.c.l.bf16 %v142
        %v275 = vunpack.c.h.bf16 %v142
        %v276 = vunpack.c.l.bf16 %v143
        %v277 = vunpack.c.h.bf16 %v143
        %v278 = vunpack.c.l.bf16 %v144
        %v279 = vunpack.c.h.bf16 %v144
        %v280 = vunpack.c.l.bf16 %v145
        %v281 = vunpack.c.h.bf16 %v145
        %v282 = vunpack.c.l.bf16 %v146
        %v283 = vunpack.c.h.bf16 %v146
        %v284 = vunpack.c.l.bf16 %v147
        %v285 = vunpack.c.h.bf16 %v147
        %v286 = vunpack.c.l.bf16 %v148
        %v287 = vunpack.c.h.bf16 %v148
        %v288 = vunpack.c.l.bf16 %v149
        %v289 = vunpack.c.h.bf16 %v149
        %v290 = vunpack.c.l.bf16 %v150
        %v291 = vunpack.c.h.bf16 %v150
        %v292 = vunpack.c.l.bf16 %v151
        %v293 = vunpack.c.h.bf16 %v151
        %v294 = vunpack.c.l.bf16 %v152
        %v295 = vunpack.c.h.bf16 %v152
        %v296 = vunpack.c.l.bf16 %v153
        %v297 = vunpack.c.h.bf16 %v153
        %v298 = vunpack.c.l.bf16 %v154
        %v299 = vunpack.c.h.bf16 %v154
        %v300 = vunpack.c.l.bf16 %v155
        %v301 = vunpack.c.h.bf16 %v155
        %v302 = vunpack.c.l.bf16 %v156
        %v303 = vunpack.c.h.bf16 %v156
        %v304 = vunpack.c.l.bf16 %v157
        %v305 = vunpack.c.h.bf16 %v157
        %v306 = vunpack.c.l.bf16 %v158
        %v307 = vunpack.c.h.bf16 %v158
        %v308 = vunpack.c.l.bf16 %v159
        %v309 = vunpack.c.h.bf16 %v159
        %v310 = vunpack.c.l.bf16 %v160
        %v311 = vunpack.c.h.bf16 %v160
        %v312 = vunpack.c.l.bf16 %v161
        %v313 = vunpack.c.h.bf16 %v161
        %v314 = vunpack.c.l.bf16 %v162
        %v315 = vunpack.c.h.bf16 %v162
        %v316 = vunpack.c.l.bf16 %v163
        %v317 = vunpack.c.h.bf16 %v163
        %v318 = vunpack.c.l.bf16 %v164
        %v319 = vunpack.c.h.bf16 %v164
        %v320 = vunpack.c.l.bf16 %v165
        %v321 = vunpack.c.h.bf16 %v165
        %v322 = vunpack.c.l.bf16 %v166
        %v323 = vunpack.c.h.bf16 %v166
        %v324 = vunpack.c.l.bf16 %v167
        %v325 = vunpack.c.h.bf16 %v167
        %v326 = vunpack.c.l.bf16 %v168
        %v327 = vunpack.c.h.bf16 %v168
        %v328 = vunpack.c.l.bf16 %v169
        %v329 = vunpack.c.h.bf16 %v169
        %v330 = vunpack.c.l.bf16 %v170
        %v331 = vunpack.c.h.bf16 %v170
        %v332 = vunpack.c.l.bf16 %v171
        %v333 = vunpack.c.h.bf16 %v171
        %v334 = vunpack.c.l.bf16 %v172
        %v335 = vunpack.c.h.bf16 %v172
        %v336 = vunpack.c.l.bf16 %v173
        %v337 = vunpack.c.h.bf16 %v173
        %v338 = vunpack.c.l.bf16 %v174
        %v339 = vunpack.c.h.bf16 %v174
        %v340 = vunpack.c.l.bf16 %v175
        %v341 = vunpack.c.h.bf16 %v175
        %v342 = vunpack.c.l.bf16 %v176
        %v343 = vunpack.c.h.bf16 %v176
        %v344 = vunpack.c.l.bf16 %v177
        %v345 = vunpack.c.h.bf16 %v177
        %v346 = vunpack.c.l.bf16 %v178
        %v347 = vunpack.c.h.bf16 %v178
        %v348 = vunpack.c.l.bf16 %v179
        %v349 = vunpack.c.h.bf16 %v179
        %v350 = vunpack.c.l.bf16 %v180
        %v351 = vunpack.c.h.bf16 %v180
        %v352 = vunpack.c.l.bf16 %v181
        %v353 = vunpack.c.h.bf16 %v181
        %v354 = vunpack.c.l.bf16 %v182
        %v355 = vunpack.c.h.bf16 %v182
        %v356 = vunpack.c.l.bf16 %v183
        %v357 = vunpack.c.h.bf16 %v183
        %v358 = vunpack.c.l.bf16 %v184
        %v359 = vunpack.c.h.bf16 %v184
        %v360 = vunpack.c.l.bf16 %v185
        %v361 = vunpack.c.h.bf16 %v185
        %v362 = vunpack.c.l.bf16 %v186
        %v363 = vunpack.c.h.bf16 %v186
        %v364 = vunpack.c.l.bf16 %v187
        %v365 = vunpack.c.h.bf16 %v187
        %v366 = vunpack.c.l.bf16 %v188
        %v367 = vunpack.c.h.bf16 %v188
        %v368 = vunpack.c.l.bf16 %v189
        %v369 = vunpack.c.h.bf16 %v189
        %v370 = vunpack.c.l.bf16 %v190
        %v371 = vunpack.c.h.bf16 %v190
        %v372 = vunpack.c.l.bf16 %v191
        %v373 = vunpack.c.h.bf16 %v191
        %v374 = vunpack.c.l.bf16 %v192
        %v375 = vunpack.c.h.bf16 %v192
        %v376 = vunpack.c.l.bf16 %v193
        %v377 = vunpack.c.h.bf16 %v193
        %v378 = vunpack.c.l.bf16 %v194
        %v379 = vunpack.c.h.bf16 %v194
        %v380 = vunpack.c.l.bf16 %v195
        %v381 = vunpack.c.h.bf16 %v195
        %v382 = vunpack.c.l.bf16 %v196
        %v383 = vunpack.c.h.bf16 %v196
        %v384 = vunpack.c.l.bf16 %v197
        %v385 = vunpack.c.h.bf16 %v197
        %v386 = vunpack.c.l.bf16 %v198
        %v387 = vunpack.c.h.bf16 %v198
        %v388 = vunpack.c.l.bf16 %v199
        %v389 = vunpack.c.h.bf16 %v199
        %v390 = vunpack.c.l.bf16 %v200
        %v391 = vunpack.c.h.bf16 %v200
        %v392 = vunpack.c.l.bf16 %v201
        %v393 = vunpack.c.h.bf16 %v201
        %v394 = vunpack.c.l.bf16 %v202
        %v395 = vunpack.c.h.bf16 %v202
        %v396 = vunpack.c.l.bf16 %v203
        %v397 = vunpack.c.h.bf16 %v203
        %v398 = vunpack.c.l.bf16 %v204
        %v399 = vunpack.c.h.bf16 %v204
        %v400 = vunpack.c.l.bf16 %v205
        %v401 = vunpack.c.h.bf16 %v205
        %v402 = vunpack.c.l.bf16 %v206
        %v403 = vunpack.c.h.bf16 %v206
        %v404 = vunpack.c.l.bf16 %v207
        %v405 = vunpack.c.h.bf16 %v207
        %v406 = vunpack.c.l.bf16 %v208
        %v407 = vunpack.c.h.bf16 %v208
        %v408 = vunpack.c.l.bf16 %v209
        %v409 = vunpack.c.h.bf16 %v209
        %v410 = vunpack.c.l.bf16 %v210
        %v411 = vunpack.c.h.bf16 %v210
        %v412 = vunpack.c.l.bf16 %v211
        %v413 = vunpack.c.h.bf16 %v211
        %v414 = vunpack.c.l.bf16 %v212
        %v415 = vunpack.c.h.bf16 %v212
        %v416 = vunpack.c.l.bf16 %v213
        %v417 = vunpack.c.h.bf16 %v213
        %v418 = vunpack.c.l.bf16 %v214
        %v419 = vunpack.c.h.bf16 %v214
        %v420 = vunpack.c.l.bf16 %v215
        %v421 = vunpack.c.h.bf16 %v215
        %v422 = vunpack.c.l.bf16 %v216
        %v423 = vunpack.c.h.bf16 %v216
        %v424 = vunpack.c.l.bf16 %v217
        %v425 = vunpack.c.h.bf16 %v217
        %v426 = vunpack.c.l.bf16 %v218
        %v427 = vunpack.c.h.bf16 %v218
        %v428 = vunpack.c.l.bf16 %v219
        %v429 = vunpack.c.h.bf16 %v219
        %v430 = vunpack.c.l.bf16 %v220
        %v431 = vunpack.c.h.bf16 %v220
        %v432 = vunpack.c.l.bf16 %v221
        %v433 = vunpack.c.h.bf16 %v221
        %v434 = vunpack.c.l.bf16 %v222
        %v435 = vunpack.c.h.bf16 %v222
        %v436 = vunpack.c.l.bf16 %v223
        %v437 = vunpack.c.h.bf16 %v223
        %v438 = vunpack.c.l.bf16 %v224
        %v439 = vunpack.c.h.bf16 %v224
        %v440 = vunpack.c.l.bf16 %v225
        %v441 = vunpack.c.h.bf16 %v225
        %v442 = vunpack.c.l.bf16 %v226
        %v443 = vunpack.c.h.bf16 %v226
        %v444 = vunpack.c.l.bf16 %v227
        %v445 = vunpack.c.h.bf16 %v227
        %v446 = vunpack.c.l.bf16 %v228
        %v447 = vunpack.c.h.bf16 %v228
        %v448 = vunpack.c.l.bf16 %v229
        %v449 = vunpack.c.h.bf16 %v229
        %v450 = vunpack.c.l.bf16 %v230
        %v451 = vunpack.c.h.bf16 %v230
        %v452 = vunpack.c.l.bf16 %v231
        %v453 = vunpack.c.h.bf16 %v231
        %v454 = vunpack.c.l.bf16 %v232
        %v455 = vunpack.c.h.bf16 %v232
        %v456 = vunpack.c.l.bf16 %v233
        %v457 = vunpack.c.h.bf16 %v233
        %v458 = vunpack.c.l.bf16 %v234
        %v459 = vunpack.c.h.bf16 %v234
        %v460 = vunpack.c.l.bf16 %v235
        %v461 = vunpack.c.h.bf16 %v235
        %v462 = vunpack.c.l.bf16 %v236
        %v463 = vunpack.c.h.bf16 %v236
        %v464 = vunpack.c.l.bf16 %v237
        %v465 = vunpack.c.h.bf16 %v237
        %v466 = vunpack.c.l.bf16 %v238
        %v467 = vunpack.c.h.bf16 %v238
        %v468 = vunpack.c.l.bf16 %v239
        %v469 = vunpack.c.h.bf16 %v239
        %v470 = vunpack.c.l.bf16 %v240
        %v471 = vunpack.c.h.bf16 %v240
        %v472 = vunpack.c.l.bf16 %v241
        %v473 = vunpack.c.h.bf16 %v241
        %v474 = vunpack.c.l.bf16 %v242
        %v475 = vunpack.c.h.bf16 %v242
        %v476 = vunpack.c.l.bf16 %v243
        %v477 = vunpack.c.h.bf16 %v243
        %v478 = vunpack.c.l.bf16 %v244
        %v479 = vunpack.c.h.bf16 %v244
        %v480 = vunpack.c.l.bf16 %v245
        %v481 = vunpack.c.h.bf16 %v245
        %v482 = vunpack.c.l.bf16 %v246
        %v483 = vunpack.c.h.bf16 %v246
        %v484 = vunpack.c.l.bf16 %v247
        %v485 = vunpack.c.h.bf16 %v247
        %v486 = vunpack.c.l.bf16 %v248
        %v487 = vunpack.c.h.bf16 %v248
        %v488 = vunpack.c.l.bf16 %v249
        %v489 = vunpack.c.h.bf16 %v249
        %v490 = vunpack.c.l.bf16 %v250
        %v491 = vunpack.c.h.bf16 %v250
        %v492 = vunpack.c.l.bf16 %v251
        %v493 = vunpack.c.h.bf16 %v251
        %v494 = vunpack.c.l.bf16 %v252
        %v495 = vunpack.c.h.bf16 %v252
        %v496 = vunpack.c.l.bf16 %v253
        %v497 = vunpack.c.h.bf16 %v253
        %v498 = vunpack.c.l.bf16 %v254
        %v499 = vunpack.c.h.bf16 %v254
        %v500 = vunpack.c.l.bf16 %v255
        %v501 = vunpack.c.h.bf16 %v255
        %v502 = vunpack.c.l.bf16 %v256
        %v503 = vunpack.c.h.bf16 %v256
        %v504 = vunpack.c.l.bf16 %v257
        %v505 = vunpack.c.h.bf16 %v257
        %v506 = vunpack.c.l.bf16 %v258
        %v507 = vunpack.c.h.bf16 %v258
        %v508 = vunpack.c.l.bf16 %v259
        %v509 = vunpack.c.h.bf16 %v259
        %v510 = vunpack.c.l.bf16 %v260
        %v511 = vunpack.c.h.bf16 %v260
        %v512 = vunpack.c.l.bf16 %v261
        %v513 = vunpack.c.h.bf16 %v261
        %v514 = vunpack.c.l.bf16 %v262
        %v515 = vunpack.c.h.bf16 %v262
        %v516 = vunpack.c.l.bf16 %v263
        %v517 = vunpack.c.h.bf16 %v263
        %v518 = vunpack.c.l.bf16 %v264
        %v519 = vunpack.c.h.bf16 %v264
        %v520 = vunpack.c.l.bf16 %v265
        %v521 = vunpack.c.h.bf16 %v265
        %522 = vst [vmem:[%s135] sm:$0xff] %v266
        %523 = vst [vmem:[%s135 + $0x8] sm:$0xff] %v267
        %524 = vst [vmem:[%s135 + $0x10] sm:$0xff] %v268
        %525 = vst [vmem:[%s135 + $0x18] sm:$0xff] %v269
        %526 = vst [vmem:[%s135 + $0x20] sm:$0xff] %v270
        %527 = vst [vmem:[%s135 + $0x28] sm:$0xff] %v271
        %528 = vst [vmem:[%s135 + $0x30] sm:$0xff] %v272
        %529 = vst [vmem:[%s135 + $0x38] sm:$0xff] %v273
        %530 = vst [vmem:[%s135 + $0x40] sm:$0xff] %v274
        %531 = vst [vmem:[%s135 + $0x48] sm:$0xff] %v275
        %532 = vst [vmem:[%s135 + $0x50] sm:$0xff] %v276
        %533 = vst [vmem:[%s135 + $0x58] sm:$0xff] %v277
        %534 = vst [vmem:[%s135 + $0x60] sm:$0xff] %v278
        %535 = vst [vmem:[%s135 + $0x68] sm:$0xff] %v279
        %536 = vst [vmem:[%s135 + $0x70] sm:$0xff] %v280
        %537 = vst [vmem:[%s135 + $0x78] sm:$0xff] %v281
        %538 = vst [vmem:[%s135 + $0x80] sm:$0xff] %v282
        %539 = vst [vmem:[%s135 + $0x88] sm:$0xff] %v283
        %540 = vst [vmem:[%s135 + $0x90] sm:$0xff] %v284
        %541 = vst [vmem:[%s135 + $0x98] sm:$0xff] %v285
        %542 = vst [vmem:[%s135 + $0xa0] sm:$0xff] %v286
        %543 = vst [vmem:[%s135 + $0xa8] sm:$0xff] %v287
        %544 = vst [vmem:[%s135 + $0xb0] sm:$0xff] %v288
        %545 = vst [vmem:[%s135 + $0xb8] sm:$0xff] %v289
        %546 = vst [vmem:[%s135 + $0xc0] sm:$0xff] %v290
        %547 = vst [vmem:[%s135 + $0xc8] sm:$0xff] %v291
        %548 = vst [vmem:[%s135 + $0xd0] sm:$0xff] %v292
        %549 = vst [vmem:[%s135 + $0xd8] sm:$0xff] %v293
        %550 = vst [vmem:[%s135 + $0xe0] sm:$0xff] %v294
        %551 = vst [vmem:[%s135 + $0xe8] sm:$0xff] %v295
        %552 = vst [vmem:[%s135 + $0xf0] sm:$0xff] %v296
        %553 = vst [vmem:[%s135 + $0xf8] sm:$0xff] %v297
        %554 = vst [vmem:[%s135 + $0x100] sm:$0xff] %v298
        %555 = vst [vmem:[%s135 + $0x108] sm:$0xff] %v299
        %556 = vst [vmem:[%s135 + $0x110] sm:$0xff] %v300
        %557 = vst [vmem:[%s135 + $0x118] sm:$0xff] %v301
        %558 = vst [vmem:[%s135 + $0x120] sm:$0xff] %v302
        %559 = vst [vmem:[%s135 + $0x128] sm:$0xff] %v303
        %560 = vst [vmem:[%s135 + $0x130] sm:$0xff] %v304
        %561 = vst [vmem:[%s135 + $0x138] sm:$0xff] %v305
        %562 = vst [vmem:[%s135 + $0x140] sm:$0xff] %v306
        %563 = vst [vmem:[%s135 + $0x148] sm:$0xff] %v307
        %564 = vst [vmem:[%s135 + $0x150] sm:$0xff] %v308
        %565 = vst [vmem:[%s135 + $0x158] sm:$0xff] %v309
        %566 = vst [vmem:[%s135 + $0x160] sm:$0xff] %v310
        %567 = vst [vmem:[%s135 + $0x168] sm:$0xff] %v311
        %568 = vst [vmem:[%s135 + $0x170] sm:$0xff] %v312
        %569 = vst [vmem:[%s135 + $0x178] sm:$0xff] %v313
        %570 = vst [vmem:[%s135 + $0x180] sm:$0xff] %v314
        %571 = vst [vmem:[%s135 + $0x188] sm:$0xff] %v315
        %572 = vst [vmem:[%s135 + $0x190] sm:$0xff] %v316
        %573 = vst [vmem:[%s135 + $0x198] sm:$0xff] %v317
        %574 = vst [vmem:[%s135 + $0x1a0] sm:$0xff] %v318
        %575 = vst [vmem:[%s135 + $0x1a8] sm:$0xff] %v319
        %576 = vst [vmem:[%s135 + $0x1b0] sm:$0xff] %v320
        %577 = vst [vmem:[%s135 + $0x1b8] sm:$0xff] %v321
        %578 = vst [vmem:[%s135 + $0x1c0] sm:$0xff] %v322
        %579 = vst [vmem:[%s135 + $0x1c8] sm:$0xff] %v323
        %580 = vst [vmem:[%s135 + $0x1d0] sm:$0xff] %v324
        %581 = vst [vmem:[%s135 + $0x1d8] sm:$0xff] %v325
        %582 = vst [vmem:[%s135 + $0x1e0] sm:$0xff] %v326
        %583 = vst [vmem:[%s135 + $0x1e8] sm:$0xff] %v327
        %584 = vst [vmem:[%s135 + $0x1f0] sm:$0xff] %v328
        %585 = vst [vmem:[%s135 + $0x1f8] sm:$0xff] %v329
        %586 = vst [vmem:[%s135 + $0x200] sm:$0xff] %v330
        %587 = vst [vmem:[%s135 + $0x208] sm:$0xff] %v331
        %588 = vst [vmem:[%s135 + $0x210] sm:$0xff] %v332
        %589 = vst [vmem:[%s135 + $0x218] sm:$0xff] %v333
        %590 = vst [vmem:[%s135 + $0x220] sm:$0xff] %v334
        %591 = vst [vmem:[%s135 + $0x228] sm:$0xff] %v335
        %592 = vst [vmem:[%s135 + $0x230] sm:$0xff] %v336
        %593 = vst [vmem:[%s135 + $0x238] sm:$0xff] %v337
        %594 = vst [vmem:[%s135 + $0x240] sm:$0xff] %v338
        %595 = vst [vmem:[%s135 + $0x248] sm:$0xff] %v339
        %596 = vst [vmem:[%s135 + $0x250] sm:$0xff] %v340
        %597 = vst [vmem:[%s135 + $0x258] sm:$0xff] %v341
        %598 = vst [vmem:[%s135 + $0x260] sm:$0xff] %v342
        %599 = vst [vmem:[%s135 + $0x268] sm:$0xff] %v343
        %600 = vst [vmem:[%s135 + $0x270] sm:$0xff] %v344
        %601 = vst [vmem:[%s135 + $0x278] sm:$0xff] %v345
        %602 = vst [vmem:[%s135 + $0x280] sm:$0xff] %v346
        %603 = vst [vmem:[%s135 + $0x288] sm:$0xff] %v347
        %604 = vst [vmem:[%s135 + $0x290] sm:$0xff] %v348
        %605 = vst [vmem:[%s135 + $0x298] sm:$0xff] %v349
        %606 = vst [vmem:[%s135 + $0x2a0] sm:$0xff] %v350
        %607 = vst [vmem:[%s135 + $0x2a8] sm:$0xff] %v351
        %608 = vst [vmem:[%s135 + $0x2b0] sm:$0xff] %v352
        %609 = vst [vmem:[%s135 + $0x2b8] sm:$0xff] %v353
        %610 = vst [vmem:[%s135 + $0x2c0] sm:$0xff] %v354
        %611 = vst [vmem:[%s135 + $0x2c8] sm:$0xff] %v355
        %612 = vst [vmem:[%s135 + $0x2d0] sm:$0xff] %v356
        %613 = vst [vmem:[%s135 + $0x2d8] sm:$0xff] %v357
        %614 = vst [vmem:[%s135 + $0x2e0] sm:$0xff] %v358
        %615 = vst [vmem:[%s135 + $0x2e8] sm:$0xff] %v359
        %616 = vst [vmem:[%s135 + $0x2f0] sm:$0xff] %v360
        %617 = vst [vmem:[%s135 + $0x2f8] sm:$0xff] %v361
        %618 = vst [vmem:[%s135 + $0x300] sm:$0xff] %v362
        %619 = vst [vmem:[%s135 + $0x308] sm:$0xff] %v363
        %620 = vst [vmem:[%s135 + $0x310] sm:$0xff] %v364
        %621 = vst [vmem:[%s135 + $0x318] sm:$0xff] %v365
        %622 = vst [vmem:[%s135 + $0x320] sm:$0xff] %v366
        %623 = vst [vmem:[%s135 + $0x328] sm:$0xff] %v367
        %624 = vst [vmem:[%s135 + $0x330] sm:$0xff] %v368
        %625 = vst [vmem:[%s135 + $0x338] sm:$0xff] %v369
        %626 = vst [vmem:[%s135 + $0x340] sm:$0xff] %v370
        %627 = vst [vmem:[%s135 + $0x348] sm:$0xff] %v371
        %628 = vst [vmem:[%s135 + $0x350] sm:$0xff] %v372
        %629 = vst [vmem:[%s135 + $0x358] sm:$0xff] %v373
        %630 = vst [vmem:[%s135 + $0x360] sm:$0xff] %v374
        %631 = vst [vmem:[%s135 + $0x368] sm:$0xff] %v375
        %632 = vst [vmem:[%s135 + $0x370] sm:$0xff] %v376
        %633 = vst [vmem:[%s135 + $0x378] sm:$0xff] %v377
        %634 = vst [vmem:[%s135 + $0x380] sm:$0xff] %v378
        %635 = vst [vmem:[%s135 + $0x388] sm:$0xff] %v379
        %636 = vst [vmem:[%s135 + $0x390] sm:$0xff] %v380
        %637 = vst [vmem:[%s135 + $0x398] sm:$0xff] %v381
        %638 = vst [vmem:[%s135 + $0x3a0] sm:$0xff] %v382
        %639 = vst [vmem:[%s135 + $0x3a8] sm:$0xff] %v383
        %640 = vst [vmem:[%s135 + $0x3b0] sm:$0xff] %v384
        %641 = vst [vmem:[%s135 + $0x3b8] sm:$0xff] %v385
        %642 = vst [vmem:[%s135 + $0x3c0] sm:$0xff] %v386
        %643 = vst [vmem:[%s135 + $0x3c8] sm:$0xff] %v387
        %644 = vst [vmem:[%s135 + $0x3d0] sm:$0xff] %v388
        %645 = vst [vmem:[%s135 + $0x3d8] sm:$0xff] %v389
        %646 = vst [vmem:[%s135 + $0x3e0] sm:$0xff] %v390
        %647 = vst [vmem:[%s135 + $0x3e8] sm:$0xff] %v391
        %648 = vst [vmem:[%s135 + $0x3f0] sm:$0xff] %v392
        %649 = vst [vmem:[%s135 + $0x3f8] sm:$0xff] %v393
        %650 = vst [vmem:[%s135 + $0x400] sm:$0xff] %v394
        %651 = vst [vmem:[%s135 + $0x408] sm:$0xff] %v395
        %652 = vst [vmem:[%s135 + $0x410] sm:$0xff] %v396
        %653 = vst [vmem:[%s135 + $0x418] sm:$0xff] %v397
        %654 = vst [vmem:[%s135 + $0x420] sm:$0xff] %v398
        %655 = vst [vmem:[%s135 + $0x428] sm:$0xff] %v399
        %656 = vst [vmem:[%s135 + $0x430] sm:$0xff] %v400
        %657 = vst [vmem:[%s135 + $0x438] sm:$0xff] %v401
        %658 = vst [vmem:[%s135 + $0x440] sm:$0xff] %v402
        %659 = vst [vmem:[%s135 + $0x448] sm:$0xff] %v403
        %660 = vst [vmem:[%s135 + $0x450] sm:$0xff] %v404
        %661 = vst [vmem:[%s135 + $0x458] sm:$0xff] %v405
        %662 = vst [vmem:[%s135 + $0x460] sm:$0xff] %v406
        %663 = vst [vmem:[%s135 + $0x468] sm:$0xff] %v407
        %664 = vst [vmem:[%s135 + $0x470] sm:$0xff] %v408
        %665 = vst [vmem:[%s135 + $0x478] sm:$0xff] %v409
        %666 = vst [vmem:[%s135 + $0x480] sm:$0xff] %v410
        %667 = vst [vmem:[%s135 + $0x488] sm:$0xff] %v411
        %668 = vst [vmem:[%s135 + $0x490] sm:$0xff] %v412
        %669 = vst [vmem:[%s135 + $0x498] sm:$0xff] %v413
        %670 = vst [vmem:[%s135 + $0x4a0] sm:$0xff] %v414
        %671 = vst [vmem:[%s135 + $0x4a8] sm:$0xff] %v415
        %672 = vst [vmem:[%s135 + $0x4b0] sm:$0xff] %v416
        %673 = vst [vmem:[%s135 + $0x4b8] sm:$0xff] %v417
        %674 = vst [vmem:[%s135 + $0x4c0] sm:$0xff] %v418
        %675 = vst [vmem:[%s135 + $0x4c8] sm:$0xff] %v419
        %676 = vst [vmem:[%s135 + $0x4d0] sm:$0xff] %v420
        %677 = vst [vmem:[%s135 + $0x4d8] sm:$0xff] %v421
        %678 = vst [vmem:[%s135 + $0x4e0] sm:$0xff] %v422
        %679 = vst [vmem:[%s135 + $0x4e8] sm:$0xff] %v423
        %680 = vst [vmem:[%s135 + $0x4f0] sm:$0xff] %v424
        %681 = vst [vmem:[%s135 + $0x4f8] sm:$0xff] %v425
        %682 = vst [vmem:[%s135 + $0x500] sm:$0xff] %v426
        %683 = vst [vmem:[%s135 + $0x508] sm:$0xff] %v427
        %684 = vst [vmem:[%s135 + $0x510] sm:$0xff] %v428
        %685 = vst [vmem:[%s135 + $0x518] sm:$0xff] %v429
        %686 = vst [vmem:[%s135 + $0x520] sm:$0xff] %v430
        %687 = vst [vmem:[%s135 + $0x528] sm:$0xff] %v431
        %688 = vst [vmem:[%s135 + $0x530] sm:$0xff] %v432
        %689 = vst [vmem:[%s135 + $0x538] sm:$0xff] %v433
        %690 = vst [vmem:[%s135 + $0x540] sm:$0xff] %v434
        %691 = vst [vmem:[%s135 + $0x548] sm:$0xff] %v435
        %692 = vst [vmem:[%s135 + $0x550] sm:$0xff] %v436
        %693 = vst [vmem:[%s135 + $0x558] sm:$0xff] %v437
        %694 = vst [vmem:[%s135 + $0x560] sm:$0xff] %v438
        %695 = vst [vmem:[%s135 + $0x568] sm:$0xff] %v439
        %696 = vst [vmem:[%s135 + $0x570] sm:$0xff] %v440
        %697 = vst [vmem:[%s135 + $0x578] sm:$0xff] %v441
        %698 = vst [vmem:[%s135 + $0x580] sm:$0xff] %v442
        %699 = vst [vmem:[%s135 + $0x588] sm:$0xff] %v443
        %700 = vst [vmem:[%s135 + $0x590] sm:$0xff] %v444
        %701 = vst [vmem:[%s135 + $0x598] sm:$0xff] %v445
        %702 = vst [vmem:[%s135 + $0x5a0] sm:$0xff] %v446
        %703 = vst [vmem:[%s135 + $0x5a8] sm:$0xff] %v447
        %704 = vst [vmem:[%s135 + $0x5b0] sm:$0xff] %v448
        %705 = vst [vmem:[%s135 + $0x5b8] sm:$0xff] %v449
        %706 = vst [vmem:[%s135 + $0x5c0] sm:$0xff] %v450
        %707 = vst [vmem:[%s135 + $0x5c8] sm:$0xff] %v451
        %708 = vst [vmem:[%s135 + $0x5d0] sm:$0xff] %v452
        %709 = vst [vmem:[%s135 + $0x5d8] sm:$0xff] %v453
        %710 = vst [vmem:[%s135 + $0x5e0] sm:$0xff] %v454
        %711 = vst [vmem:[%s135 + $0x5e8] sm:$0xff] %v455
        %712 = vst [vmem:[%s135 + $0x5f0] sm:$0xff] %v456
        %713 = vst [vmem:[%s135 + $0x5f8] sm:$0xff] %v457
        %714 = vst [vmem:[%s135 + $0x600] sm:$0xff] %v458
        %715 = vst [vmem:[%s135 + $0x608] sm:$0xff] %v459
        %716 = vst [vmem:[%s135 + $0x610] sm:$0xff] %v460
        %717 = vst [vmem:[%s135 + $0x618] sm:$0xff] %v461
        %718 = vst [vmem:[%s135 + $0x620] sm:$0xff] %v462
        %719 = vst [vmem:[%s135 + $0x628] sm:$0xff] %v463
        %720 = vst [vmem:[%s135 + $0x630] sm:$0xff] %v464
        %721 = vst [vmem:[%s135 + $0x638] sm:$0xff] %v465
        %722 = vst [vmem:[%s135 + $0x640] sm:$0xff] %v466
        %723 = vst [vmem:[%s135 + $0x648] sm:$0xff] %v467
        %724 = vst [vmem:[%s135 + $0x650] sm:$0xff] %v468
        %725 = vst [vmem:[%s135 + $0x658] sm:$0xff] %v469
        %726 = vst [vmem:[%s135 + $0x660] sm:$0xff] %v470
        %727 = vst [vmem:[%s135 + $0x668] sm:$0xff] %v471
        %728 = vst [vmem:[%s135 + $0x670] sm:$0xff] %v472
        %729 = vst [vmem:[%s135 + $0x678] sm:$0xff] %v473
        %730 = vst [vmem:[%s135 + $0x680] sm:$0xff] %v474
        %731 = vst [vmem:[%s135 + $0x688] sm:$0xff] %v475
        %732 = vst [vmem:[%s135 + $0x690] sm:$0xff] %v476
        %733 = vst [vmem:[%s135 + $0x698] sm:$0xff] %v477
        %734 = vst [vmem:[%s135 + $0x6a0] sm:$0xff] %v478
        %735 = vst [vmem:[%s135 + $0x6a8] sm:$0xff] %v479
        %736 = vst [vmem:[%s135 + $0x6b0] sm:$0xff] %v480
        %737 = vst [vmem:[%s135 + $0x6b8] sm:$0xff] %v481
        %738 = vst [vmem:[%s135 + $0x6c0] sm:$0xff] %v482
        %739 = vst [vmem:[%s135 + $0x6c8] sm:$0xff] %v483
        %740 = vst [vmem:[%s135 + $0x6d0] sm:$0xff] %v484
        %741 = vst [vmem:[%s135 + $0x6d8] sm:$0xff] %v485
        %742 = vst [vmem:[%s135 + $0x6e0] sm:$0xff] %v486
        %743 = vst [vmem:[%s135 + $0x6e8] sm:$0xff] %v487
        %744 = vst [vmem:[%s135 + $0x6f0] sm:$0xff] %v488
        %745 = vst [vmem:[%s135 + $0x6f8] sm:$0xff] %v489
        %746 = vst [vmem:[%s135 + $0x700] sm:$0xff] %v490
        %747 = vst [vmem:[%s135 + $0x708] sm:$0xff] %v491
        %748 = vst [vmem:[%s135 + $0x710] sm:$0xff] %v492
        %749 = vst [vmem:[%s135 + $0x718] sm:$0xff] %v493
        %750 = vst [vmem:[%s135 + $0x720] sm:$0xff] %v494
        %751 = vst [vmem:[%s135 + $0x728] sm:$0xff] %v495
        %752 = vst [vmem:[%s135 + $0x730] sm:$0xff] %v496
        %753 = vst [vmem:[%s135 + $0x738] sm:$0xff] %v497
        %754 = vst [vmem:[%s135 + $0x740] sm:$0xff] %v498
        %755 = vst [vmem:[%s135 + $0x748] sm:$0xff] %v499
        %756 = vst [vmem:[%s135 + $0x750] sm:$0xff] %v500
        %757 = vst [vmem:[%s135 + $0x758] sm:$0xff] %v501
        %758 = vst [vmem:[%s135 + $0x760] sm:$0xff] %v502
        %759 = vst [vmem:[%s135 + $0x768] sm:$0xff] %v503
        %760 = vst [vmem:[%s135 + $0x770] sm:$0xff] %v504
        %761 = vst [vmem:[%s135 + $0x778] sm:$0xff] %v505
        %762 = vst [vmem:[%s135 + $0x780] sm:$0xff] %v506
        %763 = vst [vmem:[%s135 + $0x788] sm:$0xff] %v507
        %764 = vst [vmem:[%s135 + $0x790] sm:$0xff] %v508
        %765 = vst [vmem:[%s135 + $0x798] sm:$0xff] %v509
        %766 = vst [vmem:[%s135 + $0x7a0] sm:$0xff] %v510
        %767 = vst [vmem:[%s135 + $0x7a8] sm:$0xff] %v511
        %768 = vst [vmem:[%s135 + $0x7b0] sm:$0xff] %v512
        %769 = vst [vmem:[%s135 + $0x7b8] sm:$0xff] %v513
        %770 = vst [vmem:[%s135 + $0x7c0] sm:$0xff] %v514
        %771 = vst [vmem:[%s135 + $0x7c8] sm:$0xff] %v515
        %772 = vst [vmem:[%s135 + $0x7d0] sm:$0xff] %v516
        %773 = vst [vmem:[%s135 + $0x7d8] sm:$0xff] %v517
        %774 = vst [vmem:[%s135 + $0x7e0] sm:$0xff] %v518
        %775 = vst [vmem:[%s135 + $0x7e8] sm:$0xff] %v519
        %776 = vst [vmem:[%s135 + $0x7f0] sm:$0xff] %v520
        %777 = vst [vmem:[%s135 + $0x7f8] sm:$0xff] %v521
        %s778 = sand.u32 %s52, 1
        %s779 = scalar_lea.sflag [#allocation4], %s778
        %s780 = sand.u32 %s52, 1
        %s781 = smul.addr %s780, 2048
        %s782 = scalar_lea.vmem [#allocation5], %s781
        // Predicated region
        $region29: #{_pallas_cast_f32.1} parent=23 // pred_check
          %p783 = pneg %p62
        $region30: #{_pallas_cast_f32.1} parent=23 // pred_check_branch
          %785 = sbr.rel (%p783) target = $region32
        $region31: #{_pallas_cast_f32.1} parent=23 // pred_region
          %s786 = smul.u32 64, %s18
          %s788 = ssub.s32 32768, 32768
          %789 = vsyncadd %s779, %s788
          %s790 = smul.addr %s786, 4
          %s791 = smul.addr %s790, 128
          %s792 = scalar_lea.hbm %s1, %s791
          %s793 = sshll.u32 %s782, 4
          %s794 = int_to_ptr.vmem [resolvable:$true] %s793
          %799 = dma.vmem_to_hbm [thread:$0]  %s794, 32768, %s792, %s779, 512, 512, 32
        $region32: #{_pallas_cast_f32.1} parent=23 // pred_fallthru
          _
      $region24: #{_pallas_cast_f32.1} parent=5 // pred_fallthru
        _
      %p800 = scmp.le.s32.totalorder 2, %s13
      // Predicated region
      $region33: #{_pallas_cast_f32.1} parent=5 // pred_check
        %p801 = pneg %p800
      $region34: #{_pallas_cast_f32.1} parent=5 // pred_check_branch
        %803 = sbr.rel (%p801) target = $region36
      $region35: #{_pallas_cast_f32.1} parent=5 // pred_region
        %s804 = ssub.s32 %s13, 2
        // Predicated region
        $region37: #{_pallas_cast_f32.1} parent=35 // pred_check
          %p805 = pneg %p68
        $region38: #{_pallas_cast_f32.1} parent=35 // pred_check_branch
          %807 = sbr.rel (%p805) target = $region40
        $region39: #{_pallas_cast_f32.1} parent=35 // pred_region
          %s808 = sand.u32 %s53, 1
          %s809 = scalar_lea.sflag [#allocation4], %s808
          %s810 = sand.u32 %s53, 1
          %s811 = smul.addr %s810, 2048
          %s812 = scalar_lea.vmem [#allocation5], %s811
          %813 = dma.done %s809, 32768
        $region40: #{_pallas_cast_f32.1} parent=35 // pred_fallthru
          _
      $region36: #{_pallas_cast_f32.1} parent=5 // pred_fallthru
        _
    $region6: #{_pallas_cast_f32.1} parent=1 // loop_footer
      %s17 = sadd.s32 1, %s13
    $region7: #{_pallas_cast_f32.1} parent=1 // loop_footer_branch
      %12 = sbr.rel target = $region3
    $region8: #{_pallas_cast_f32.1} parent=1 // loop_exit
      _
    %814 = vsyncpa [#allocation3], 1
    %s815 = scalar_lea.sflag [#allocation3], 1
    %816 = vsyncpa %s815, 1
    %817 = vsyncpa [#allocation4], 1
    %s818 = scalar_lea.sflag [#allocation4], 1
    %819 = vsyncpa %s818, 1

</llo_original>
